<compile_context>
chip_gen: v5e
topology: v5e:2x2
jax: 0.10.0
libtpu: 0.0.40
codegen_flags: <defaults>
</compile_context>

<pallas_src>
import functools

import jax
import jax.numpy as jnp
from jax.experimental import pallas as pl
from jax.experimental.pallas import tpu as pltpu


def _round_up(x, m):
    return (x + m - 1) // m * m


# ----------------------- optimized stride == 1 kernel -----------------------

def _appearance_kernel_s1(key_ref, qc_ref, out_ref, *, k, wp, l_pad):
    # key_ref: (Cb, Kflat)   flattened padded key rows (zero tail)
    # qc_ref : (Cb, L_pad)   flattened query centers (junk columns already 0)
    # out_ref: (Cb, k*k, L_pad)
    qc = qc_ref[...]                               # load once, reuse for all windows
    for di in range(k):
        for dj in range(k):
            p = di * k + dj
            off = di * wp + dj                     # static lane offset of this window
            win = key_ref[:, off:off + l_pad]      # contiguous slice == sliding window
            out_ref[:, p, :] = win * qc            # lane-dense store (L_pad % 128 == 0)


# ----------------------- general-stride fallback kernel -----------------------
# TODO(synk): stride > 1 path is correct but not lane-optimized (lane dim is Wo and
# windows are in-kernel strided slices); pre-stride in the wrapper if it matters.

def _appearance_kernel_general(key_ref, qc_ref, out_ref, *, k, stride, ho, wo):
    # key_ref: (C, Hp, Wp); qc_ref: (C, Ho, Wo); out_ref: (C, k*k, Ho, Wo)
    key = key_ref[...]
    qc = qc_ref[...]
    hi = (ho - 1) * stride + 1
    wi = (wo - 1) * stride + 1
    for di in range(k):
        for dj in range(k):
            p = di * k + dj
            win = key[:, di:di + hi:stride, dj:dj + wi:stride]
            out_ref[:, p, :, :] = win * qc


# --------------------------------- wrapper ---------------------------------

def _pick_c_block(C, per_channel_block_bytes, budget_bytes):
    """Largest channel tile (C itself, or a multiple-of-8 divisor of C) whose
    double-buffered blocks fit the VMEM budget."""
    def need(cb):
        return 2 * cb * per_channel_block_bytes
    if need(C) <= budget_bytes:
        return C
    cands = sorted((d for d in range(8, C, 8) if C % d == 0), reverse=True)
    for d in cands:
        if need(d) <= budget_bytes:
            return d
    return cands[-1] if cands else C


def appearance_composability(key_map, query_map, *, kernel_size, padding, stride,
                             native_layout=False):
    """Pallas TPU implementation of AppearanceComposability.forward((key, query)).

    Returns (B, C, L, k*k) like the PyTorch module.  With native_layout=True it
    returns the kernel-native lane-dense layout (B, C, k*k, L) and skips the
    final transpose (cheaper if the consumer can accept that layout).
    """
    B, C, H, W = key_map.shape
    k = kernel_size
    ho = (H + 2 * padding - k) // stride + 1
    wo = (W + 2 * padding - k) // stride + 1
    hp, wp = H + 2 * padding, W + 2 * padding
    dtype = key_map.dtype
    itemsize = jnp.dtype(dtype).itemsize

    pad_cfg = ((0, 0), (0, 0), (padding, padding), (padding, padding))
    key_p = jnp.pad(key_map, pad_cfg)
    query_p = jnp.pad(query_map, pad_cfg)

    # Patch-center offsets matching PyTorch's flat index k*k // 2 (valid for even k too).
    dc_i, dc_j = divmod((k * k) // 2, k)
    hi = (ho - 1) * stride + 1
    wi = (wo - 1) * stride + 1
    qc = query_p[:, :, dc_i:dc_i + hi:stride, dc_j:dc_j + wi:stride]  # (B, C, Ho, Wo)

    if stride == 1:
        # Lane-dense formulation: flattened key row + "padded row stride" output
        # layout L' = Ho * Wp, rounded up to a multiple of 128 lanes.
        l_row = ho * wp
        l_pad = _round_up(l_row, 128)
        kflat = _round_up((k - 1) * (wp + 1) + l_pad, 128)

        key_flat = key_p.reshape(B, C, hp * wp)
        key_flat = jnp.pad(key_flat, ((0, 0), (0, 0), (0, kflat - hp * wp)))

        # q_center flattened to L', zero in junk columns (j >= Wo) and the tail.
        qc_row = jnp.pad(qc, ((0, 0), (0, 0), (0, 0), (0, wp - wo))).reshape(B, C, l_row)
        qc_row = jnp.pad(qc_row, ((0, 0), (0, 0), (0, l_pad - l_row)))

        per_c_bytes = (kflat + l_pad + k * k * l_pad) * itemsize
        c_blk = _pick_c_block(C, per_c_bytes, budget_bytes=12 << 20)
        vmem_limit = int(max(32 << 20, 2 * c_blk * per_c_bytes + (2 << 20)))

        kernel = functools.partial(_appearance_kernel_s1, k=k, wp=wp, l_pad=l_pad)
        out_kern = pl.pallas_call(
            kernel,
            out_shape=jax.ShapeDtypeStruct((B, C, k * k, l_pad), dtype),
            grid=(B, C // c_blk),
            in_specs=[
                pl.BlockSpec((pl.Squeezed(), c_blk, kflat), lambda b, cb: (b, cb, 0)),
                pl.BlockSpec((pl.Squeezed(), c_blk, l_pad), lambda b, cb: (b, cb, 0)),
            ],
            out_specs=pl.BlockSpec((pl.Squeezed(), c_blk, k * k, l_pad),
                                   lambda b, cb: (b, cb, 0, 0)),
            compiler_params=pltpu.CompilerParams(
                dimension_semantics=("parallel", "parallel"),
                vmem_limit_bytes=vmem_limit),
        )(key_flat, qc_row)

        # Strip alignment tail + junk columns -> (B, C, k*k, L).
        out_native = (out_kern[..., :l_row]
                      .reshape(B, C, k * k, ho, wp)[..., :wo]
                      .reshape(B, C, k * k, ho * wo))
    else:
        # General-stride fallback (see kernel TODO above).
        kernel = functools.partial(_appearance_kernel_general, k=k, stride=stride,
                                   ho=ho, wo=wo)
        out5 = pl.pallas_call(
            kernel,
            out_shape=jax.ShapeDtypeStruct((B, C, k * k, ho, wo), dtype),
            grid=(B,),
            in_specs=[
                pl.BlockSpec((pl.Squeezed(), C, hp, wp), lambda b: (b, 0, 0, 0)),
                pl.BlockSpec((pl.Squeezed(), C, ho, wo), lambda b: (b, 0, 0, 0)),
            ],
            out_specs=pl.BlockSpec((pl.Squeezed(), C, k * k, ho, wo),
                                   lambda b: (b, 0, 0, 0, 0)),
            compiler_params=pltpu.CompilerParams(dimension_semantics=("parallel",)),
        )(key_p, qc)
        out_native = out5.reshape(B, C, k * k, ho * wo)

    if native_layout:
        return out_native                          # (B, C, k*k, L), lane-dense
    # PyTorch layout (B, C, L, k*k).  This transpose re-streams the k*k-amplified
    # tensor through HBM once; prefer native_layout=True when the consumer allows.
    return out_native.transpose(0, 1, 3, 2)


# ---------------- pure-JAX reference (mirrors the PyTorch forward) ----------------

def _unfold_ref(x, k, padding, stride):
    """nn.Unfold(kernel_size=k, dilation=1, padding, stride): (B,C,H,W) -> (B, C*k*k, L)."""
    B, C, H, W = x.shape
    ho = (H + 2 * padding - k) // stride + 1
    wo = (W + 2 * padding - k) // stride + 1
    xp = jnp.pad(x, ((0, 0), (0, 0), (padding, padding), (padding, padding)))
    hi = (ho - 1) * stride + 1
    wi = (wo - 1) * stride + 1
    cols = []
    for c in range(C):
        for di in range(k):
            for dj in range(k):
                cols.append(
                    xp[:, c, di:di + hi:stride, dj:dj + wi:stride].reshape(B, ho * wo)
                )
    return jnp.stack(cols, axis=1)


def _reference(key_map, query_map, k, padding, stride):
    B, C = key_map.shape[0], key_map.shape[1]
    ku = _unfold_ref(key_map, k, padding, stride).transpose(0, 2, 1)    # (B, L, C*k*k)
    qu = _unfold_ref(query_map, k, padding, stride).transpose(0, 2, 1)
    ku = ku.reshape(B, -1, C, ku.shape[-1] // C).transpose(0, 2, 1, 3)  # (B, C, L, k*k)
    qu = qu.reshape(B, -1, C, qu.shape[-1] // C).transpose(0, 2, 1, 3)
    center = (k * k) // 2
    return (ku * qu[:, :, :, center:center + 1]).reshape(
        ku.shape[0], ku.shape[1], ku.shape[2], k * k
    )


if __name__ == "__main__":
    B, C, H, W = 2, 4, 16, 16
    kernel_size, padding, stride = 3, 1, 1

    rng = jax.random.PRNGKey(0)
    k1, k2 = jax.random.split(rng)
    key_map = jax.random.normal(k1, (B, C, H, W), dtype=jnp.float32)
    query_map = jax.random.normal(k2, (B, C, H, W), dtype=jnp.float32)

    out = appearance_composability(
        key_map, query_map, kernel_size=kernel_size, padding=padding, stride=stride
    )
    out = jax.block_until_ready(out)

    ref = _reference(key_map, query_map, kernel_size, padding, stride)
    ho = (H + 2 * padding - kernel_size) // stride + 1
    wo = (W + 2 * padding - kernel_size) // stride + 1
    assert out.shape == (B, C, ho * wo, kernel_size * kernel_size), out.shape
    assert jnp.allclose(out, ref, atol=1e-5, rtol=1e-5), "mismatch vs reference"
    print("KERNEL_OK")
</pallas_src>

<mosaic_0001>
module attributes {stable_mosaic.version = 11 : i64} {
  func.func @_appearance_kernel_s1(%arg0: i32, %arg1: i32, %arg2: memref<1x4x512xf32, #tpu.memory_space<vmem>>, %arg3: memref<1x4x384xf32, #tpu.memory_space<vmem>>, %arg4: memref<1x4x9x384xf32, #tpu.memory_space<vmem>>) attributes {dimension_semantics = [#tpu.dimension_semantics<parallel>, #tpu.dimension_semantics<parallel>], iteration_bounds = array<i64: 2, 1>, scalar_prefetch = 0 : i64, scratch_operands = 0 : i64, tpu.core_type = #tpu.core_type<tc>, window_params = [{transform_indices = @transform_0, window_bounds = array<i64: 1, 4, 512>}, {transform_indices = @transform_1, window_bounds = array<i64: 1, 4, 384>}, {transform_indices = @transform_2, window_bounds = array<i64: 1, 4, 9, 384>}]} {
    %c0 = arith.constant 0 : index
    %c0_0 = arith.constant 0 : index
    %c0_1 = arith.constant 0 : index
    %0 = vector.load %arg3[%c0, %c0_0, %c0_1] : memref<1x4x384xf32, #tpu.memory_space<vmem>>, vector<1x4x384xf32>
    %1 = vector.shape_cast %0 : vector<1x4x384xf32> to vector<4x384xf32>
    %c0_2 = arith.constant 0 : index
    %c0_3 = arith.constant 0 : index
    %c0_4 = arith.constant 0 : index
    %2 = vector.load %arg2[%c0_2, %c0_3, %c0_4] : memref<1x4x512xf32, #tpu.memory_space<vmem>>, vector<1x4x384xf32>
    %3 = vector.shape_cast %2 : vector<1x4x384xf32> to vector<4x384xf32>
    %4 = arith.mulf %3, %1 : vector<4x384xf32>
    %c0_5 = arith.constant 0 : index
    %c0_6 = arith.constant 0 : index
    %c0_7 = arith.constant 0 : index
    %c0_8 = arith.constant 0 : index
    %5 = vector.load %arg4[%c0_5, %c0_6, %c0_7, %c0_8] : memref<1x4x9x384xf32, #tpu.memory_space<vmem>>, vector<1x4x1x384xf32>
    %6 = vector.shape_cast %5 : vector<1x4x1x384xf32> to vector<4x384xf32>
    %7 = vector.shape_cast %4 : vector<4x384xf32> to vector<1x4x1x384xf32>
    tpu.vector_store %arg4[%c0_5, %c0_6, %c0_7, %c0_8], %7 {strides = array<i32>} : memref<1x4x9x384xf32, #tpu.memory_space<vmem>>, vector<1x4x1x384xf32>,
    %c0_9 = arith.constant 0 : index
    %c0_10 = arith.constant 0 : index
    %c1 = arith.constant 1 : index
    %8 = vector.load %arg2[%c0_9, %c0_10, %c1] : memref<1x4x512xf32, #tpu.memory_space<vmem>>, vector<1x4x384xf32>
    %9 = vector.shape_cast %8 : vector<1x4x384xf32> to vector<4x384xf32>
    %10 = arith.mulf %9, %1 : vector<4x384xf32>
    %c0_11 = arith.constant 0 : index
    %c0_12 = arith.constant 0 : index
    %c1_13 = arith.constant 1 : index
    %c0_14 = arith.constant 0 : index
    %11 = vector.load %arg4[%c0_11, %c0_12, %c1_13, %c0_14] : memref<1x4x9x384xf32, #tpu.memory_space<vmem>>, vector<1x4x1x384xf32>
    %12 = vector.shape_cast %11 : vector<1x4x1x384xf32> to vector<4x384xf32>
    %13 = vector.shape_cast %10 : vector<4x384xf32> to vector<1x4x1x384xf32>
    tpu.vector_store %arg4[%c0_11, %c0_12, %c1_13, %c0_14], %13 {strides = array<i32>} : memref<1x4x9x384xf32, #tpu.memory_space<vmem>>, vector<1x4x1x384xf32>,
    %c0_15 = arith.constant 0 : index
    %c0_16 = arith.constant 0 : index
    %c2 = arith.constant 2 : index
    %14 = vector.load %arg2[%c0_15, %c0_16, %c2] : memref<1x4x512xf32, #tpu.memory_space<vmem>>, vector<1x4x384xf32>
    %15 = vector.shape_cast %14 : vector<1x4x384xf32> to vector<4x384xf32>
    %16 = arith.mulf %15, %1 : vector<4x384xf32>
    %c0_17 = arith.constant 0 : index
    %c0_18 = arith.constant 0 : index
    %c2_19 = arith.constant 2 : index
    %c0_20 = arith.constant 0 : index
    %17 = vector.load %arg4[%c0_17, %c0_18, %c2_19, %c0_20] : memref<1x4x9x384xf32, #tpu.memory_space<vmem>>, vector<1x4x1x384xf32>
    %18 = vector.shape_cast %17 : vector<1x4x1x384xf32> to vector<4x384xf32>
    %19 = vector.shape_cast %16 : vector<4x384xf32> to vector<1x4x1x384xf32>
    tpu.vector_store %arg4[%c0_17, %c0_18, %c2_19, %c0_20], %19 {strides = array<i32>} : memref<1x4x9x384xf32, #tpu.memory_space<vmem>>, vector<1x4x1x384xf32>,
    %c0_21 = arith.constant 0 : index
    %c0_22 = arith.constant 0 : index
    %c18 = arith.constant 18 : index
    %20 = vector.load %arg2[%c0_21, %c0_22, %c18] : memref<1x4x512xf32, #tpu.memory_space<vmem>>, vector<1x4x384xf32>
    %21 = vector.shape_cast %20 : vector<1x4x384xf32> to vector<4x384xf32>
    %22 = arith.mulf %21, %1 : vector<4x384xf32>
    %c0_23 = arith.constant 0 : index
    %c0_24 = arith.constant 0 : index
    %c3 = arith.constant 3 : index
    %c0_25 = arith.constant 0 : index
    %23 = vector.load %arg4[%c0_23, %c0_24, %c3, %c0_25] : memref<1x4x9x384xf32, #tpu.memory_space<vmem>>, vector<1x4x1x384xf32>
    %24 = vector.shape_cast %23 : vector<1x4x1x384xf32> to vector<4x384xf32>
    %25 = vector.shape_cast %22 : vector<4x384xf32> to vector<1x4x1x384xf32>
    tpu.vector_store %arg4[%c0_23, %c0_24, %c3, %c0_25], %25 {strides = array<i32>} : memref<1x4x9x384xf32, #tpu.memory_space<vmem>>, vector<1x4x1x384xf32>,
    %c0_26 = arith.constant 0 : index
    %c0_27 = arith.constant 0 : index
    %c19 = arith.constant 19 : index
    %26 = vector.load %arg2[%c0_26, %c0_27, %c19] : memref<1x4x512xf32, #tpu.memory_space<vmem>>, vector<1x4x384xf32>
    %27 = vector.shape_cast %26 : vector<1x4x384xf32> to vector<4x384xf32>
    %28 = arith.mulf %27, %1 : vector<4x384xf32>
    %c0_28 = arith.constant 0 : index
    %c0_29 = arith.constant 0 : index
    %c4 = arith.constant 4 : index
    %c0_30 = arith.constant 0 : index
    %29 = vector.load %arg4[%c0_28, %c0_29, %c4, %c0_30] : memref<1x4x9x384xf32, #tpu.memory_space<vmem>>, vector<1x4x1x384xf32>
    %30 = vector.shape_cast %29 : vector<1x4x1x384xf32> to vector<4x384xf32>
    %31 = vector.shape_cast %28 : vector<4x384xf32> to vector<1x4x1x384xf32>
    tpu.vector_store %arg4[%c0_28, %c0_29, %c4, %c0_30], %31 {strides = array<i32>} : memref<1x4x9x384xf32, #tpu.memory_space<vmem>>, vector<1x4x1x384xf32>,
    %c0_31 = arith.constant 0 : index
    %c0_32 = arith.constant 0 : index
    %c20 = arith.constant 20 : index
    %32 = vector.load %arg2[%c0_31, %c0_32, %c20] : memref<1x4x512xf32, #tpu.memory_space<vmem>>, vector<1x4x384xf32>
    %33 = vector.shape_cast %32 : vector<1x4x384xf32> to vector<4x384xf32>
    %34 = arith.mulf %33, %1 : vector<4x384xf32>
    %c0_33 = arith.constant 0 : index
    %c0_34 = arith.constant 0 : index
    %c5 = arith.constant 5 : index
    %c0_35 = arith.constant 0 : index
    %35 = vector.load %arg4[%c0_33, %c0_34, %c5, %c0_35] : memref<1x4x9x384xf32, #tpu.memory_space<vmem>>, vector<1x4x1x384xf32>
    %36 = vector.shape_cast %35 : vector<1x4x1x384xf32> to vector<4x384xf32>
    %37 = vector.shape_cast %34 : vector<4x384xf32> to vector<1x4x1x384xf32>
    tpu.vector_store %arg4[%c0_33, %c0_34, %c5, %c0_35], %37 {strides = array<i32>} : memref<1x4x9x384xf32, #tpu.memory_space<vmem>>, vector<1x4x1x384xf32>,
    %c0_36 = arith.constant 0 : index
    %c0_37 = arith.constant 0 : index
    %c36 = arith.constant 36 : index
    %38 = vector.load %arg2[%c0_36, %c0_37, %c36] : memref<1x4x512xf32, #tpu.memory_space<vmem>>, vector<1x4x384xf32>
    %39 = vector.shape_cast %38 : vector<1x4x384xf32> to vector<4x384xf32>
    %40 = arith.mulf %39, %1 : vector<4x384xf32>
    %c0_38 = arith.constant 0 : index
    %c0_39 = arith.constant 0 : index
    %c6 = arith.constant 6 : index
    %c0_40 = arith.constant 0 : index
    %41 = vector.load %arg4[%c0_38, %c0_39, %c6, %c0_40] : memref<1x4x9x384xf32, #tpu.memory_space<vmem>>, vector<1x4x1x384xf32>
    %42 = vector.shape_cast %41 : vector<1x4x1x384xf32> to vector<4x384xf32>
    %43 = vector.shape_cast %40 : vector<4x384xf32> to vector<1x4x1x384xf32>
    tpu.vector_store %arg4[%c0_38, %c0_39, %c6, %c0_40], %43 {strides = array<i32>} : memref<1x4x9x384xf32, #tpu.memory_space<vmem>>, vector<1x4x1x384xf32>,
    %c0_41 = arith.constant 0 : index
    %c0_42 = arith.constant 0 : index
    %c37 = arith.constant 37 : index
    %44 = vector.load %arg2[%c0_41, %c0_42, %c37] : memref<1x4x512xf32, #tpu.memory_space<vmem>>, vector<1x4x384xf32>
    %45 = vector.shape_cast %44 : vector<1x4x384xf32> to vector<4x384xf32>
    %46 = arith.mulf %45, %1 : vector<4x384xf32>
    %c0_43 = arith.constant 0 : index
    %c0_44 = arith.constant 0 : index
    %c7 = arith.constant 7 : index
    %c0_45 = arith.constant 0 : index
    %47 = vector.load %arg4[%c0_43, %c0_44, %c7, %c0_45] : memref<1x4x9x384xf32, #tpu.memory_space<vmem>>, vector<1x4x1x384xf32>
    %48 = vector.shape_cast %47 : vector<1x4x1x384xf32> to vector<4x384xf32>
    %49 = vector.shape_cast %46 : vector<4x384xf32> to vector<1x4x1x384xf32>
    tpu.vector_store %arg4[%c0_43, %c0_44, %c7, %c0_45], %49 {strides = array<i32>} : memref<1x4x9x384xf32, #tpu.memory_space<vmem>>, vector<1x4x1x384xf32>,
    %c0_46 = arith.constant 0 : index
    %c0_47 = arith.constant 0 : index
    %c38 = arith.constant 38 : index
    %50 = vector.load %arg2[%c0_46, %c0_47, %c38] : memref<1x4x512xf32, #tpu.memory_space<vmem>>, vector<1x4x384xf32>
    %51 = vector.shape_cast %50 : vector<1x4x384xf32> to vector<4x384xf32>
    %52 = arith.mulf %51, %1 : vector<4x384xf32>
    %c0_48 = arith.constant 0 : index
    %c0_49 = arith.constant 0 : index
    %c8 = arith.constant 8 : index
    %c0_50 = arith.constant 0 : index
    %53 = vector.load %arg4[%c0_48, %c0_49, %c8, %c0_50] : memref<1x4x9x384xf32, #tpu.memory_space<vmem>>, vector<1x4x1x384xf32>
    %54 = vector.shape_cast %53 : vector<1x4x1x384xf32> to vector<4x384xf32>
    %55 = vector.shape_cast %52 : vector<4x384xf32> to vector<1x4x1x384xf32>
    tpu.vector_store %arg4[%c0_48, %c0_49, %c8, %c0_50], %55 {strides = array<i32>} : memref<1x4x9x384xf32, #tpu.memory_space<vmem>>, vector<1x4x1x384xf32>,
    return
  }
  func.func @transform_0(%arg0: i32, %arg1: i32) -> (i32, i32, i32) {
    %c0_i32 = arith.constant 0 : i32
    %c0_i32_0 = arith.constant 0 : i32
    return %arg0, %arg1, %c0_i32 : i32, i32, i32
  }
  func.func @transform_1(%arg0: i32, %arg1: i32) -> (i32, i32, i32) {
    %c0_i32 = arith.constant 0 : i32
    %c0_i32_0 = arith.constant 0 : i32
    return %arg0, %arg1, %c0_i32 : i32, i32, i32
  }
  func.func @transform_2(%arg0: i32, %arg1: i32) -> (i32, i32, i32, i32) {
    %c0_i32 = arith.constant 0 : i32
    %c0_i32_0 = arith.constant 0 : i32
    %c0_i32_1 = arith.constant 0 : i32
    return %arg0, %arg1, %c0_i32, %c0_i32_0 : i32, i32, i32, i32
  }
}

</mosaic_0001>

<llo_original>
// kernel: tpu_custom_call.1
$region0: #{tpu_custom_call.1}
  #allocation0 [shape = 'u32[]', space=smem, size = 0x4, offset = 0x4, fixed_abs, tag = 'smem constant byte address 0x4 - core index']
  #allocation1 [shape = 'u32[72,128]{1,0:T(1,128)}', space=vmem, size = 0x9000, scoped, tag = 'internal scratch']
  %s0 = inlined_call_operand.hbm [shape: f32[2,4,512], index: 0, kind: input, shape index: {}]
  %s1 = inlined_call_operand.hbm [shape: f32[2,4,384], index: 1, kind: input, shape index: {}]
  %s2 = inlined_call_operand.vmem [shape: f32[2,4,9,384], index: 2, kind: output, shape index: {}]
  %s3 = sld [smem:[#allocation0]]
  $region49: #{tpu_custom_call.1} parent=0
    _
  %s5 = ssub.s32 1, %s3
  %s6 = scalar_select 0, %s5, %s3
  $region1: #{tpu_custom_call.1} parent=0
    #allocation2 [shape = 'u8[16384]{0}', space=vmem, size = 0x4000, scoped, tag = 'input window, operand 0']
    #allocation3 [shape = 's32[2]{0}', space=sflag, size = 0x8, scoped, tag = 'scoped memory for tpu_custom_call.1']
    #allocation4 [shape = 'u8[12288]{0}', space=vmem, size = 0x3000, scoped, tag = 'input window, operand 1']
    #allocation5 [shape = 's32[2]{0}', space=sflag, size = 0x8, scoped, tag = 'scoped memory for tpu_custom_call.1']
    %7 = vsyncpa [#allocation3], 0
    %s8 = scalar_lea.sflag [#allocation3], 1
    %9 = vsyncpa %s8, 0
    %10 = vsyncpa [#allocation5], 0
    %s11 = scalar_lea.sflag [#allocation5], 1
    %12 = vsyncpa %s11, 0
    loop: start=0, step=1, limit=4
    $region2: #{tpu_custom_call.1} parent=1 // loop_pre_header
      _
    $region3: #{tpu_custom_call.1} parent=1 // loop_header
      %s14 = sphi 0, %s18
      %p15 = scmp.ge.s32.totalorder %s14, 4
      %s21 = sphi 0, %s33
      %s22 = sphi 0, %s29
      %s23 = sphi 0, %s21
      %s24 = sphi 0, %s22
      %s25 = sphi 0, %s23
      %s26 = sphi 0, %s24
      %s38 = sphi 0, %s40
      %s41 = sphi 0, %s38
      %s42 = sphi 0, %s41
      %s58 = sphi 0, %s42
      %s66 = sphi 0, %s68
      %s69 = sphi 0, %s66
      %s70 = sphi 0, %s69
      %s86 = sphi 0, %s70
      %s94 = sphi 0, %s96
      %s97 = sphi 0, %s94
      %s98 = sphi 0, %s97
      %s114 = sphi 0, %s98
    $region4: #{tpu_custom_call.1} parent=1 // loop_header_branch
      %17 = sbr.rel (%p15) target = $region8
    $region5: #{tpu_custom_call.1} parent=1 // loop_body
      %s19 = ssub.s32 %s14, 1
      %s20 = ssub.s32 %s14, 2
      %s27 = sadd.s32 1, %s22
      %p28 = scmp.ge.s32.totalorder %s27, 1
      %s29 = scalar_select %p28, 0, %s27
      %s30 = sadd.s32 1, %s21
      %s31 = scalar_select %p28, %s30, %s21
      %p32 = scmp.ge.s32.totalorder %s31, 2
      %s33 = scalar_select %p32, 0, %s31
      %s34 = ssub.s32 %s21, %s33
      %s35 = ssub.s32 %s22, %s29
      %s36 = sor.u32 %s34, %s35
      %p37 = scmp.eq.s32.totalorder %s36, 0
      %s39 = sadd.s32 %s38, 1
      %s40 = scalar_select %p37, %s38, %s39
      %p43 = pneg %p37
      %p44 = scmp.eq.s32.totalorder %s14, 1
      %p45 = por %p43, %p44
      %p46 = scmp.ne.s32.totalorder %s38, %s41
      %p47 = scmp.eq.s32.totalorder %s14, 0
      %p48 = por %p46, %p47
      %p49 = scmp.ne.s32.totalorder %s38, %s41
      %p50 = scmp.eq.s32.totalorder %s19, 1
      %p51 = por %p49, %p50
      %p52 = scmp.ne.s32.totalorder %s41, %s42
      %p53 = scmp.eq.s32.totalorder %s19, 0
      %p54 = por %p52, %p53
      %p55 = scmp.ne.s32.totalorder %s41, %s42
      %p56 = scmp.eq.s32.totalorder %s20, 1
      %p57 = por %p55, %p56
      %p59 = scmp.ne.s32.totalorder %s42, %s58
      %p60 = scmp.eq.s32.totalorder %s20, 0
      %p61 = por %p59, %p60
      %s62 = ssub.s32 %s21, %s33
      %s63 = ssub.s32 %s22, %s29
      %s64 = sor.u32 %s62, %s63
      %p65 = scmp.eq.s32.totalorder %s64, 0
      %s67 = sadd.s32 %s66, 1
      %s68 = scalar_select %p65, %s66, %s67
      %p71 = pneg %p65
      %p72 = scmp.eq.s32.totalorder %s14, 1
      %p73 = por %p71, %p72
      %p74 = scmp.ne.s32.totalorder %s66, %s69
      %p75 = scmp.eq.s32.totalorder %s14, 0
      %p76 = por %p74, %p75
      %p77 = scmp.ne.s32.totalorder %s66, %s69
      %p78 = scmp.eq.s32.totalorder %s19, 1
      %p79 = por %p77, %p78
      %p80 = scmp.ne.s32.totalorder %s69, %s70
      %p81 = scmp.eq.s32.totalorder %s19, 0
      %p82 = por %p80, %p81
      %p83 = scmp.ne.s32.totalorder %s69, %s70
      %p84 = scmp.eq.s32.totalorder %s20, 1
      %p85 = por %p83, %p84
      %p87 = scmp.ne.s32.totalorder %s70, %s86
      %p88 = scmp.eq.s32.totalorder %s20, 0
      %p89 = por %p87, %p88
      %s90 = ssub.s32 %s21, %s33
      %s91 = ssub.s32 %s22, %s29
      %s92 = sor.u32 %s90, %s91
      %p93 = scmp.eq.s32.totalorder %s92, 0
      %s95 = sadd.s32 %s94, 1
      %s96 = scalar_select %p93, %s94, %s95
      %p99 = pneg %p93
      %p100 = scmp.eq.s32.totalorder %s14, 1
      %p101 = por %p99, %p100
      %p102 = scmp.ne.s32.totalorder %s94, %s97
      %p103 = scmp.eq.s32.totalorder %s14, 0
      %p104 = por %p102, %p103
      %p105 = scmp.ne.s32.totalorder %s94, %s97
      %p106 = scmp.eq.s32.totalorder %s19, 1
      %p107 = por %p105, %p106
      %p108 = scmp.ne.s32.totalorder %s97, %s98
      %p109 = scmp.eq.s32.totalorder %s19, 0
      %p110 = por %p108, %p109
      %p111 = scmp.ne.s32.totalorder %s97, %s98
      %p112 = scmp.eq.s32.totalorder %s20, 1
      %p113 = por %p111, %p112
      %p115 = scmp.ne.s32.totalorder %s98, %s114
      %p116 = scmp.eq.s32.totalorder %s20, 0
      %p117 = por %p115, %p116
      %p118 = scmp.le.s32.totalorder 1, %s14
      %p119 = scmp.lt.s32.totalorder %s14, 3
      %p120 = pnand %p118, %p119
      %p121 = pneg %p120
      // Predicated region
      $region9: #{tpu_custom_call.1} parent=5 // pred_check
        _
      $region10: #{tpu_custom_call.1} parent=5 // pred_check_branch
        %123 = sbr.rel (%p120) target = $region12
      $region11: #{tpu_custom_call.1} parent=5 // pred_region
        %s124 = ssub.s32 %s14, 1
      $region12: #{tpu_custom_call.1} parent=5 // pred_fallthru
        _
      %p125 = scmp.lt.s32.totalorder %s14, 2
      // Predicated region
      $region13: #{tpu_custom_call.1} parent=5 // pred_check
        %p126 = pneg %p125
      $region14: #{tpu_custom_call.1} parent=5 // pred_check_branch
        %128 = sbr.rel (%p126) target = $region16
      $region15: #{tpu_custom_call.1} parent=5 // pred_region
        // Predicated region
        $region17: #{tpu_custom_call.1} parent=15 // pred_check
          %p129 = pneg %p48
        $region18: #{tpu_custom_call.1} parent=15 // pred_check_branch
          %131 = sbr.rel (%p129) target = $region20
        $region19: #{tpu_custom_call.1} parent=15 // pred_region
          %s132 = sand.u32 %s38, 1
          %s133 = scalar_lea.sflag [#allocation3], %s132
          %s134 = sand.u32 %s38, 1
          %s135 = smul.addr %s134, 16
          %s136 = scalar_lea.vmem [#allocation2], %s135
          %138 = vsyncadd %s133, 0
          %s139 = smul.addr %s22, 4
          %s140 = smul.addr %s21, 4
          %s141 = sadd.s32 %s139, %s140
          %s142 = smul.addr %s141, 4
          %s143 = scalar_lea.hbm %s0, %s142
          %s145 = sshll.u32 %s143, 4
          %s146 = int_to_ptr.hbm [resolvable:$true] %s145
          %s147 = sshll.u32 %s136, 4
          %s148 = int_to_ptr.vmem [resolvable:$true] %s147
          %150 = dma.hbm_to_vmem [thread:$0]  %s146, 256, %s148, %s133
        $region20: #{tpu_custom_call.1} parent=15 // pred_fallthru
          _
        // Predicated region
        $region21: #{tpu_custom_call.1} parent=15 // pred_check
          %p151 = pneg %p76
        $region22: #{tpu_custom_call.1} parent=15 // pred_check_branch
          %153 = sbr.rel (%p151) target = $region24
        $region23: #{tpu_custom_call.1} parent=15 // pred_region
          %s154 = sand.u32 %s66, 1
          %s155 = scalar_lea.sflag [#allocation5], %s154
          %s156 = sand.u32 %s66, 1
          %s157 = smul.addr %s156, 12
          %s158 = scalar_lea.vmem [#allocation4], %s157
          %160 = vsyncadd %s155, 0
          %s161 = smul.addr %s22, 3
          %s162 = smul.addr %s21, 3
          %s163 = sadd.s32 %s161, %s162
          %s164 = smul.addr %s163, 4
          %s165 = scalar_lea.hbm %s1, %s164
          %s167 = sshll.u32 %s165, 4
          %s168 = int_to_ptr.hbm [resolvable:$true] %s167
          %s169 = sshll.u32 %s158, 4
          %s170 = int_to_ptr.vmem [resolvable:$true] %s169
          %172 = dma.hbm_to_vmem [thread:$0]  %s168, 192, %s170, %s155
        $region24: #{tpu_custom_call.1} parent=15 // pred_fallthru
          _
      $region16: #{tpu_custom_call.1} parent=5 // pred_fallthru
        _
      %p173 = scmp.le.s32.totalorder 1, %s14
      %p174 = scmp.lt.s32.totalorder %s14, 3
      %p175 = pnand %p173, %p174
      %p176 = pneg %p175
      // Predicated region
      $region25: #{tpu_custom_call.1} parent=5 // pred_check
        _
      $region26: #{tpu_custom_call.1} parent=5 // pred_check_branch
        %178 = sbr.rel (%p175) target = $region28
      $region27: #{tpu_custom_call.1} parent=5 // pred_region
        %s179 = ssub.s32 %s14, 1
        %s180 = sand.u32 %s41, 1
        %s181 = scalar_lea.sflag [#allocation3], %s180
        %s182 = sand.u32 %s41, 1
        %s183 = smul.addr %s182, 16
        %s184 = scalar_lea.vmem [#allocation2], %s183
        // Predicated region
        $region29: #{tpu_custom_call.1} parent=27 // pred_check
          %p185 = pneg %p54
        $region30: #{tpu_custom_call.1} parent=27 // pred_check_branch
          %187 = sbr.rel (%p185) target = $region32
        $region31: #{tpu_custom_call.1} parent=27 // pred_region
          %189 = dma.done %s181, 256
        $region32: #{tpu_custom_call.1} parent=27 // pred_fallthru
          _
        %s190 = sand.u32 %s69, 1
        %s191 = scalar_lea.sflag [#allocation5], %s190
        %s192 = sand.u32 %s69, 1
        %s193 = smul.addr %s192, 12
        %s194 = scalar_lea.vmem [#allocation4], %s193
        // Predicated region
        $region33: #{tpu_custom_call.1} parent=27 // pred_check
          %p195 = pneg %p82
        $region34: #{tpu_custom_call.1} parent=27 // pred_check_branch
          %197 = sbr.rel (%p195) target = $region36
        $region35: #{tpu_custom_call.1} parent=27 // pred_region
          %199 = dma.done %s191, 192
        $region36: #{tpu_custom_call.1} parent=27 // pred_fallthru
          _
        %s200 = sand.u32 %s41, 1
        %s201 = scalar_lea.sflag [#allocation3], %s200
        %s202 = sand.u32 %s41, 1
        %s203 = smul.addr %s202, 16
        %s204 = scalar_lea.vmem [#allocation2], %s203
        %p205 = pneg %p54
        %p206 = pneg %p51
        %s207 = sand.u32 %s69, 1
        %s208 = scalar_lea.sflag [#allocation5], %s207
        %s209 = sand.u32 %s69, 1
        %s210 = smul.addr %s209, 12
        %s211 = scalar_lea.vmem [#allocation4], %s210
        %p212 = pneg %p82
        %p213 = pneg %p79
        %p214 = pneg %p110
        %p215 = pneg %p107
        %s216 = smul.u32 4, %s24
        %p217 = scmp.lt.s32.totalorder %s23, 1
        %s218 = scalar_select %p217, %s23, 1
        %p219 = scmp.lt.s32.totalorder %s216, 3
        %s220 = scalar_select %p219, %s216, 3
        %s221 = smul.addr %s220, 6
        %s222 = smul.addr %s218, 24
        %s223 = sadd.s32 %s221, %s222
        %s224 = smul.addr %s223, 8
        %s225 = scalar_lea.vmem %s2, %s224
        %s226 = smul.u32 4, %s24
        %p227 = scmp.lt.s32.totalorder %s23, 1
        %s228 = scalar_select %p227, %s23, 1
        %p229 = scmp.lt.s32.totalorder %s226, 3
        %s230 = scalar_select %p229, %s226, 3
        %s231 = smul.addr %s230, 6
        %s232 = smul.addr %s228, 24
        %s233 = sadd.s32 %s231, %s232
        %s234 = smul.addr %s233, 8
        %s235 = scalar_lea.vmem %s2, %s234
        %s236 = smul.u32 4, %s24
        %v237 = vld [vmem:[%s194] sm:$0xff]
        %v238 = vld [vmem:[%s194 + $0x8] sm:$0xf]
        %v239 = vld [vmem:[%s184] sm:$0xff]
        %v240 = vld [vmem:[%s184 + $0x8] sm:$0xf]
        %v241 = vmul.f32 %v239, %v237
        %v242 = vmul.f32 %v240, %v238
        %v245 = vrot.slane %v241, 3
        %v246 = vrot.slane %v242, 6
        %v247 = vrot.slane %v242, 1
        %vm248 = vcmask 1040384
        %v249 = vsel %vm248, %v241, %v245
        %vm250 = vcmask 1042434
        %v251 = vsel %vm250, %v246, %v247
        %vm252 = vcmask 1041408
        %v253 = vsel %vm252, %v249, %v251
        %vm254 = vcmask 1041409
        %v255 = vsel %vm254, %v241, %v245
        %vm256 = vcmask 1043459
        %v257 = vsel %vm256, %v246, %v247
        %vm258 = vcmask 1042433
        %v259 = vsel %vm258, %v255, %v257
        %v260 = vrot.slane %v259, 1
        %v261 = vsel %vm250, %v241, %v245
        %vm262 = vcmask 1044484
        %v263 = vsel %vm262, %v246, %v247
        %vm264 = vcmask 1043458
        %v265 = vsel %vm264, %v261, %v263
        %v266 = vrot.slane %v265, 2
        %v267 = vsel %vm256, %v241, %v245
        %vm268 = vcmask 1045509
        %v269 = vsel %vm268, %v246, %v247
        %vm270 = vcmask 1044483
        %v271 = vsel %vm270, %v267, %v269
        %v272 = vrot.slane %v271, 3
        %v277 = vlaneseq
        %vm278 = vcmp.ge.s32.totalorder %v277, 0
        %vm279 = vcmp.lt.s32.totalorder %v277, 384
        %vm280 = vmand %vm278, %vm279
        %281 = vst.msk [vmem:[%s235] ss:$8 sm:$0x7] %vm280, %v253
        %282 = vst.msk [vmem:[%s235] ss:$8 sm:$0x0] %vm280, %v253
        %s283 = scalar_lea.vmem %s235, 48
        %284 = vst.msk [vmem:[%s283] ss:$8 sm:$0x7] %vm280, %v260
        %285 = vst.msk [vmem:[%s283] ss:$8 sm:$0x0] %vm280, %v260
        %s286 = scalar_lea.vmem %s235, 96
        %287 = vst.msk [vmem:[%s286] ss:$8 sm:$0x7] %vm280, %v266
        %288 = vst.msk [vmem:[%s286] ss:$8 sm:$0x0] %vm280, %v266
        %s289 = scalar_lea.vmem %s235, 144
        %290 = vst.msk [vmem:[%s289] ss:$8 sm:$0x7] %vm280, %v272
        %291 = vst.msk [vmem:[%s289] ss:$8 sm:$0x0] %vm280, %v272
        %v292 = vld [vmem:[%s184] sm:$0xff]
        %v293 = vld [vmem:[%s184 + $0x8] sm:$0xff]
        %296 = vrot.lane.b32.xlu0 %v237, 1
        %v297 = vpop.permute.xlu0 %296
        %298 = vrot.lane.b32.xlu0 %v238, 1
        %v299 = vpop.permute.xlu0 %298
        %v300 = vrot.slane %v297, 4
        %v301 = vrot.slane %v299, 4
        %vm302 = vcmask 7168
        %v303 = vsel %vm302, %v300, %v297
        %vm304 = vcmask 1043456
        %v305 = vsel %vm304, %v300, %v301
        %v306 = vsel %vm302, %v305, %v299
        %v309 = vmul.f32 %v292, %v303
        %v310 = vmul.f32 %v293, %v306
        %v313 = vrot.slane %v309, 3
        %v314 = vrot.slane %v310, 6
        %v315 = vrot.slane %v310, 1
        %v316 = vsel %vm248, %v309, %v313
        %v317 = vsel %vm250, %v314, %v315
        %v318 = vsel %vm252, %v316, %v317
        %v319 = vsel %vm254, %v309, %v313
        %v320 = vsel %vm256, %v314, %v315
        %v321 = vsel %vm258, %v319, %v320
        %v322 = vrot.slane %v321, 1
        %v323 = vsel %vm250, %v309, %v313
        %v324 = vsel %vm262, %v314, %v315
        %v325 = vsel %vm264, %v323, %v324
        %v326 = vrot.slane %v325, 2
        %v327 = vsel %vm256, %v309, %v313
        %v328 = vsel %vm268, %v314, %v315
        %v329 = vsel %vm270, %v327, %v328
        %v330 = vrot.slane %v329, 3
        %331 = vrot.lane.b32.xlu0 %v318, 127
        %v332 = vpop.permute.xlu0 %331
        %333 = vrot.lane.b32.xlu0 %v322, 127
        %v334 = vpop.permute.xlu0 %333
        %335 = vrot.lane.b32.xlu0 %v326, 127
        %v336 = vpop.permute.xlu0 %335
        %337 = vrot.lane.b32.xlu0 %v330, 127
        %v338 = vpop.permute.xlu0 %337
        %v339 = vrot.slane %v332, 1
        %v340 = vrot.slane %v334, 1
        %v341 = vrot.slane %v336, 1
        %v342 = vrot.slane %v338, 1
        %vm343 = vcmask 1039360
        %v344 = vsel %vm343, %v332, %v339
        %v345 = vsel %vm343, %v334, %v340
        %v346 = vsel %vm343, %v336, %v341
        %v347 = vsel %vm343, %v338, %v342
        %s352 = scalar_lea.vmem %s235, 1
        %353 = vst.msk [vmem:[%s352] ss:$8 sm:$0x7] %vm280, %v344
        %354 = vst.msk [vmem:[%s352] ss:$8 sm:$0x0] %vm280, %v344
        %s355 = scalar_lea.vmem %s235, 49
        %356 = vst.msk [vmem:[%s355] ss:$8 sm:$0x7] %vm280, %v345
        %357 = vst.msk [vmem:[%s355] ss:$8 sm:$0x0] %vm280, %v345
        %s358 = scalar_lea.vmem %s235, 97
        %359 = vst.msk [vmem:[%s358] ss:$8 sm:$0x7] %vm280, %v346
        %360 = vst.msk [vmem:[%s358] ss:$8 sm:$0x0] %vm280, %v346
        %s361 = scalar_lea.vmem %s235, 145
        %362 = vst.msk [vmem:[%s361] ss:$8 sm:$0x7] %vm280, %v347
        %363 = vst.msk [vmem:[%s361] ss:$8 sm:$0x0] %vm280, %v347
        %v364 = vld [vmem:[%s184] sm:$0xff]
        %v365 = vld [vmem:[%s184 + $0x8] sm:$0xff]
        %366 = vrot.lane.b32.xlu0 %v237, 2
        %v367 = vpop.permute.xlu0 %366
        %368 = vrot.lane.b32.xlu0 %v238, 2
        %v369 = vpop.permute.xlu0 %368
        %v370 = vrot.slane %v367, 4
        %v371 = vrot.slane %v369, 4
        %vm372 = vcmask 15360
        %v373 = vsel %vm372, %v370, %v367
        %v374 = vsel %vm304, %v370, %v371
        %v375 = vsel %vm372, %v374, %v369
        %v378 = vmul.f32 %v364, %v373
        %v379 = vmul.f32 %v365, %v375
        %v382 = vrot.slane %v378, 3
        %v383 = vrot.slane %v379, 6
        %v384 = vrot.slane %v379, 1
        %v385 = vsel %vm248, %v378, %v382
        %v386 = vsel %vm250, %v383, %v384
        %v387 = vsel %vm252, %v385, %v386
        %v388 = vsel %vm254, %v378, %v382
        %v389 = vsel %vm256, %v383, %v384
        %v390 = vsel %vm258, %v388, %v389
        %v391 = vrot.slane %v390, 1
        %v392 = vsel %vm250, %v378, %v382
        %v393 = vsel %vm262, %v383, %v384
        %v394 = vsel %vm264, %v392, %v393
        %v395 = vrot.slane %v394, 2
        %v396 = vsel %vm256, %v378, %v382
        %v397 = vsel %vm268, %v383, %v384
        %v398 = vsel %vm270, %v396, %v397
        %v399 = vrot.slane %v398, 3
        %400 = vrot.lane.b32.xlu0 %v387, 126
        %v401 = vpop.permute.xlu0 %400
        %402 = vrot.lane.b32.xlu0 %v391, 126
        %v403 = vpop.permute.xlu0 %402
        %404 = vrot.lane.b32.xlu0 %v395, 126
        %v405 = vpop.permute.xlu0 %404
        %406 = vrot.lane.b32.xlu0 %v399, 126
        %v407 = vpop.permute.xlu0 %406
        %v408 = vrot.slane %v401, 1
        %v409 = vrot.slane %v403, 1
        %v410 = vrot.slane %v405, 1
        %v411 = vrot.slane %v407, 1
        %vm412 = vcmask 1031168
        %v413 = vsel %vm412, %v401, %v408
        %v414 = vsel %vm412, %v403, %v409
        %v415 = vsel %vm412, %v405, %v410
        %v416 = vsel %vm412, %v407, %v411
        %s421 = scalar_lea.vmem %s235, 2
        %422 = vst.msk [vmem:[%s421] ss:$8 sm:$0x7] %vm280, %v413
        %423 = vst.msk [vmem:[%s421] ss:$8 sm:$0x0] %vm280, %v413
        %s424 = scalar_lea.vmem %s235, 50
        %425 = vst.msk [vmem:[%s424] ss:$8 sm:$0x7] %vm280, %v414
        %426 = vst.msk [vmem:[%s424] ss:$8 sm:$0x0] %vm280, %v414
        %s427 = scalar_lea.vmem %s235, 98
        %428 = vst.msk [vmem:[%s427] ss:$8 sm:$0x7] %vm280, %v415
        %429 = vst.msk [vmem:[%s427] ss:$8 sm:$0x0] %vm280, %v415
        %s430 = scalar_lea.vmem %s235, 146
        %431 = vst.msk [vmem:[%s430] ss:$8 sm:$0x7] %vm280, %v416
        %432 = vst.msk [vmem:[%s430] ss:$8 sm:$0x0] %vm280, %v416
        %v433 = vld [vmem:[%s184] sm:$0xff]
        %v434 = vld [vmem:[%s184 + $0x8] sm:$0xff]
        %435 = vrot.lane.b32.xlu0 %v237, 18
        %v436 = vpop.permute.xlu0 %435
        %437 = vrot.lane.b32.xlu0 %v238, 18
        %v438 = vpop.permute.xlu0 %437
        %v439 = vrot.slane %v436, 4
        %v440 = vrot.slane %v438, 4
        %vm441 = vcmask 146432
        %v442 = vsel %vm441, %v439, %v436
        %v443 = vsel %vm304, %v439, %v440
        %v444 = vsel %vm441, %v443, %v438
        %v447 = vmul.f32 %v433, %v442
        %v448 = vmul.f32 %v434, %v444
        %v451 = vrot.slane %v447, 3
        %v452 = vrot.slane %v448, 6
        %v453 = vrot.slane %v448, 1
        %v454 = vsel %vm248, %v447, %v451
        %v455 = vsel %vm250, %v452, %v453
        %v456 = vsel %vm252, %v454, %v455
        %v457 = vsel %vm254, %v447, %v451
        %v458 = vsel %vm256, %v452, %v453
        %v459 = vsel %vm258, %v457, %v458
        %v460 = vrot.slane %v459, 1
        %v461 = vsel %vm250, %v447, %v451
        %v462 = vsel %vm262, %v452, %v453
        %v463 = vsel %vm264, %v461, %v462
        %v464 = vrot.slane %v463, 2
        %v465 = vsel %vm256, %v447, %v451
        %v466 = vsel %vm268, %v452, %v453
        %v467 = vsel %vm270, %v465, %v466
        %v468 = vrot.slane %v467, 3
        %469 = vrot.lane.b32.xlu0 %v456, 110
        %v470 = vpop.permute.xlu0 %469
        %471 = vrot.lane.b32.xlu0 %v460, 110
        %v472 = vpop.permute.xlu0 %471
        %473 = vrot.lane.b32.xlu0 %v464, 110
        %v474 = vpop.permute.xlu0 %473
        %475 = vrot.lane.b32.xlu0 %v468, 110
        %v476 = vpop.permute.xlu0 %475
        %v477 = vrot.slane %v470, 1
        %v478 = vrot.slane %v472, 1
        %v479 = vrot.slane %v474, 1
        %v480 = vrot.slane %v476, 1
        %vm481 = vcmask 900096
        %v482 = vsel %vm481, %v470, %v477
        %v483 = vsel %vm481, %v472, %v478
        %v484 = vsel %vm481, %v474, %v479
        %v485 = vsel %vm481, %v476, %v480
        %s490 = scalar_lea.vmem %s235, 3
        %491 = vst.msk [vmem:[%s490] ss:$8 sm:$0x7] %vm280, %v482
        %492 = vst.msk [vmem:[%s490] ss:$8 sm:$0x0] %vm280, %v482
        %s493 = scalar_lea.vmem %s235, 51
        %494 = vst.msk [vmem:[%s493] ss:$8 sm:$0x7] %vm280, %v483
        %495 = vst.msk [vmem:[%s493] ss:$8 sm:$0x0] %vm280, %v483
        %s496 = scalar_lea.vmem %s235, 99
        %497 = vst.msk [vmem:[%s496] ss:$8 sm:$0x7] %vm280, %v484
        %498 = vst.msk [vmem:[%s496] ss:$8 sm:$0x0] %vm280, %v484
        %s499 = scalar_lea.vmem %s235, 147
        %500 = vst.msk [vmem:[%s499] ss:$8 sm:$0x7] %vm280, %v485
        %501 = vst.msk [vmem:[%s499] ss:$8 sm:$0x0] %vm280, %v485
        %v502 = vld [vmem:[%s184] sm:$0xff]
        %v503 = vld [vmem:[%s184 + $0x8] sm:$0xff]
        %504 = vrot.lane.b32.xlu0 %v237, 19
        %v505 = vpop.permute.xlu0 %504
        %506 = vrot.lane.b32.xlu0 %v238, 19
        %v507 = vpop.permute.xlu0 %506
        %v508 = vrot.slane %v505, 4
        %v509 = vrot.slane %v507, 4
        %vm510 = vcmask 154624
        %v511 = vsel %vm510, %v508, %v505
        %v512 = vsel %vm304, %v508, %v509
        %v513 = vsel %vm510, %v512, %v507
        %v516 = vmul.f32 %v502, %v511
        %v517 = vmul.f32 %v503, %v513
        %v520 = vrot.slane %v516, 3
        %v521 = vrot.slane %v517, 6
        %v522 = vrot.slane %v517, 1
        %v523 = vsel %vm248, %v516, %v520
        %v524 = vsel %vm250, %v521, %v522
        %v525 = vsel %vm252, %v523, %v524
        %v526 = vsel %vm254, %v516, %v520
        %v527 = vsel %vm256, %v521, %v522
        %v528 = vsel %vm258, %v526, %v527
        %v529 = vrot.slane %v528, 1
        %v530 = vsel %vm250, %v516, %v520
        %v531 = vsel %vm262, %v521, %v522
        %v532 = vsel %vm264, %v530, %v531
        %v533 = vrot.slane %v532, 2
        %v534 = vsel %vm256, %v516, %v520
        %v535 = vsel %vm268, %v521, %v522
        %v536 = vsel %vm270, %v534, %v535
        %v537 = vrot.slane %v536, 3
        %538 = vrot.lane.b32.xlu0 %v525, 109
        %v539 = vpop.permute.xlu0 %538
        %540 = vrot.lane.b32.xlu0 %v529, 109
        %v541 = vpop.permute.xlu0 %540
        %542 = vrot.lane.b32.xlu0 %v533, 109
        %v543 = vpop.permute.xlu0 %542
        %544 = vrot.lane.b32.xlu0 %v537, 109
        %v545 = vpop.permute.xlu0 %544
        %v546 = vrot.slane %v539, 1
        %v547 = vrot.slane %v541, 1
        %v548 = vrot.slane %v543, 1
        %v549 = vrot.slane %v545, 1
        %vm550 = vcmask 891904
        %v551 = vsel %vm550, %v539, %v546
        %v552 = vsel %vm550, %v541, %v547
        %v553 = vsel %vm550, %v543, %v548
        %v554 = vsel %vm550, %v545, %v549
        %s559 = scalar_lea.vmem %s235, 4
        %560 = vst.msk [vmem:[%s559] ss:$8 sm:$0x7] %vm280, %v551
        %561 = vst.msk [vmem:[%s559] ss:$8 sm:$0x0] %vm280, %v551
        %s562 = scalar_lea.vmem %s235, 52
        %563 = vst.msk [vmem:[%s562] ss:$8 sm:$0x7] %vm280, %v552
        %564 = vst.msk [vmem:[%s562] ss:$8 sm:$0x0] %vm280, %v552
        %s565 = scalar_lea.vmem %s235, 100
        %566 = vst.msk [vmem:[%s565] ss:$8 sm:$0x7] %vm280, %v553
        %567 = vst.msk [vmem:[%s565] ss:$8 sm:$0x0] %vm280, %v553
        %s568 = scalar_lea.vmem %s235, 148
        %569 = vst.msk [vmem:[%s568] ss:$8 sm:$0x7] %vm280, %v554
        %570 = vst.msk [vmem:[%s568] ss:$8 sm:$0x0] %vm280, %v554
        %v571 = vld [vmem:[%s184] sm:$0xff]
        %v572 = vld [vmem:[%s184 + $0x8] sm:$0xff]
        %573 = vrot.lane.b32.xlu0 %v237, 20
        %v574 = vpop.permute.xlu0 %573
        %575 = vrot.lane.b32.xlu0 %v238, 20
        %v576 = vpop.permute.xlu0 %575
        %v577 = vrot.slane %v574, 4
        %v578 = vrot.slane %v576, 4
        %vm579 = vcmask 162816
        %v580 = vsel %vm579, %v577, %v574
        %v581 = vsel %vm304, %v577, %v578
        %v582 = vsel %vm579, %v581, %v576
        %v585 = vmul.f32 %v571, %v580
        %v586 = vmul.f32 %v572, %v582
        %v589 = vrot.slane %v585, 3
        %v590 = vrot.slane %v586, 6
        %v591 = vrot.slane %v586, 1
        %v592 = vsel %vm248, %v585, %v589
        %v593 = vsel %vm250, %v590, %v591
        %v594 = vsel %vm252, %v592, %v593
        %v595 = vsel %vm254, %v585, %v589
        %v596 = vsel %vm256, %v590, %v591
        %v597 = vsel %vm258, %v595, %v596
        %v598 = vrot.slane %v597, 1
        %v599 = vsel %vm250, %v585, %v589
        %v600 = vsel %vm262, %v590, %v591
        %v601 = vsel %vm264, %v599, %v600
        %v602 = vrot.slane %v601, 2
        %v603 = vsel %vm256, %v585, %v589
        %v604 = vsel %vm268, %v590, %v591
        %v605 = vsel %vm270, %v603, %v604
        %v606 = vrot.slane %v605, 3
        %607 = vrot.lane.b32.xlu0 %v594, 108
        %v608 = vpop.permute.xlu0 %607
        %609 = vrot.lane.b32.xlu0 %v598, 108
        %v610 = vpop.permute.xlu0 %609
        %611 = vrot.lane.b32.xlu0 %v602, 108
        %v612 = vpop.permute.xlu0 %611
        %613 = vrot.lane.b32.xlu0 %v606, 108
        %v614 = vpop.permute.xlu0 %613
        %v615 = vrot.slane %v608, 1
        %v616 = vrot.slane %v610, 1
        %v617 = vrot.slane %v612, 1
        %v618 = vrot.slane %v614, 1
        %vm619 = vcmask 883712
        %v620 = vsel %vm619, %v608, %v615
        %v621 = vsel %vm619, %v610, %v616
        %v622 = vsel %vm619, %v612, %v617
        %v623 = vsel %vm619, %v614, %v618
        %s628 = scalar_lea.vmem %s235, 5
        %629 = vst.msk [vmem:[%s628] ss:$8 sm:$0x7] %vm280, %v620
        %630 = vst.msk [vmem:[%s628] ss:$8 sm:$0x0] %vm280, %v620
        %s631 = scalar_lea.vmem %s235, 53
        %632 = vst.msk [vmem:[%s631] ss:$8 sm:$0x7] %vm280, %v621
        %633 = vst.msk [vmem:[%s631] ss:$8 sm:$0x0] %vm280, %v621
        %s634 = scalar_lea.vmem %s235, 101
        %635 = vst.msk [vmem:[%s634] ss:$8 sm:$0x7] %vm280, %v622
        %636 = vst.msk [vmem:[%s634] ss:$8 sm:$0x0] %vm280, %v622
        %s637 = scalar_lea.vmem %s235, 149
        %638 = vst.msk [vmem:[%s637] ss:$8 sm:$0x7] %vm280, %v623
        %639 = vst.msk [vmem:[%s637] ss:$8 sm:$0x0] %vm280, %v623
        %v640 = vld [vmem:[%s184] sm:$0xff]
        %v641 = vld [vmem:[%s184 + $0x8] sm:$0xff]
        %642 = vrot.lane.b32.xlu0 %v237, 36
        %v643 = vpop.permute.xlu0 %642
        %644 = vrot.lane.b32.xlu0 %v238, 36
        %v645 = vpop.permute.xlu0 %644
        %v646 = vrot.slane %v643, 4
        %v647 = vrot.slane %v645, 4
        %vm648 = vcmask 293888
        %v649 = vsel %vm648, %v646, %v643
        %v650 = vsel %vm304, %v646, %v647
        %v651 = vsel %vm648, %v650, %v645
        %v654 = vmul.f32 %v640, %v649
        %v655 = vmul.f32 %v641, %v651
        %v658 = vrot.slane %v654, 3
        %v659 = vrot.slane %v655, 6
        %v660 = vrot.slane %v655, 1
        %v661 = vsel %vm248, %v654, %v658
        %v662 = vsel %vm250, %v659, %v660
        %v663 = vsel %vm252, %v661, %v662
        %v664 = vsel %vm254, %v654, %v658
        %v665 = vsel %vm256, %v659, %v660
        %v666 = vsel %vm258, %v664, %v665
        %v667 = vrot.slane %v666, 1
        %v668 = vsel %vm250, %v654, %v658
        %v669 = vsel %vm262, %v659, %v660
        %v670 = vsel %vm264, %v668, %v669
        %v671 = vrot.slane %v670, 2
        %v672 = vsel %vm256, %v654, %v658
        %v673 = vsel %vm268, %v659, %v660
        %v674 = vsel %vm270, %v672, %v673
        %v675 = vrot.slane %v674, 3
        %676 = vrot.lane.b32.xlu0 %v663, 92
        %v677 = vpop.permute.xlu0 %676
        %678 = vrot.lane.b32.xlu0 %v667, 92
        %v679 = vpop.permute.xlu0 %678
        %680 = vrot.lane.b32.xlu0 %v671, 92
        %v681 = vpop.permute.xlu0 %680
        %682 = vrot.lane.b32.xlu0 %v675, 92
        %v683 = vpop.permute.xlu0 %682
        %v684 = vrot.slane %v677, 1
        %v685 = vrot.slane %v679, 1
        %v686 = vrot.slane %v681, 1
        %v687 = vrot.slane %v683, 1
        %vm688 = vcmask 752640
        %v689 = vsel %vm688, %v677, %v684
        %v690 = vsel %vm688, %v679, %v685
        %v691 = vsel %vm688, %v681, %v686
        %v692 = vsel %vm688, %v683, %v687
        %s697 = scalar_lea.vmem %s235, 6
        %698 = vst.msk [vmem:[%s697] ss:$8 sm:$0x7] %vm280, %v689
        %699 = vst.msk [vmem:[%s697] ss:$8 sm:$0x0] %vm280, %v689
        %s700 = scalar_lea.vmem %s235, 54
        %701 = vst.msk [vmem:[%s700] ss:$8 sm:$0x7] %vm280, %v690
        %702 = vst.msk [vmem:[%s700] ss:$8 sm:$0x0] %vm280, %v690
        %s703 = scalar_lea.vmem %s235, 102
        %704 = vst.msk [vmem:[%s703] ss:$8 sm:$0x7] %vm280, %v691
        %705 = vst.msk [vmem:[%s703] ss:$8 sm:$0x0] %vm280, %v691
        %s706 = scalar_lea.vmem %s235, 150
        %707 = vst.msk [vmem:[%s706] ss:$8 sm:$0x7] %vm280, %v692
        %708 = vst.msk [vmem:[%s706] ss:$8 sm:$0x0] %vm280, %v692
        %v709 = vld [vmem:[%s184] sm:$0xff]
        %v710 = vld [vmem:[%s184 + $0x8] sm:$0xff]
        %711 = vrot.lane.b32.xlu0 %v237, 37
        %v712 = vpop.permute.xlu0 %711
        %713 = vrot.lane.b32.xlu0 %v238, 37
        %v714 = vpop.permute.xlu0 %713
        %v715 = vrot.slane %v712, 4
        %v716 = vrot.slane %v714, 4
        %vm717 = vcmask 302080
        %v718 = vsel %vm717, %v715, %v712
        %v719 = vsel %vm304, %v715, %v716
        %v720 = vsel %vm717, %v719, %v714
        %v723 = vmul.f32 %v709, %v718
        %v724 = vmul.f32 %v710, %v720
        %v727 = vrot.slane %v723, 3
        %v728 = vrot.slane %v724, 6
        %v729 = vrot.slane %v724, 1
        %v730 = vsel %vm248, %v723, %v727
        %v731 = vsel %vm250, %v728, %v729
        %v732 = vsel %vm252, %v730, %v731
        %v733 = vsel %vm254, %v723, %v727
        %v734 = vsel %vm256, %v728, %v729
        %v735 = vsel %vm258, %v733, %v734
        %v736 = vrot.slane %v735, 1
        %v737 = vsel %vm250, %v723, %v727
        %v738 = vsel %vm262, %v728, %v729
        %v739 = vsel %vm264, %v737, %v738
        %v740 = vrot.slane %v739, 2
        %v741 = vsel %vm256, %v723, %v727
        %v742 = vsel %vm268, %v728, %v729
        %v743 = vsel %vm270, %v741, %v742
        %v744 = vrot.slane %v743, 3
        %745 = vrot.lane.b32.xlu0 %v732, 91
        %v746 = vpop.permute.xlu0 %745
        %747 = vrot.lane.b32.xlu0 %v736, 91
        %v748 = vpop.permute.xlu0 %747
        %749 = vrot.lane.b32.xlu0 %v740, 91
        %v750 = vpop.permute.xlu0 %749
        %751 = vrot.lane.b32.xlu0 %v744, 91
        %v752 = vpop.permute.xlu0 %751
        %v753 = vrot.slane %v746, 1
        %v754 = vrot.slane %v748, 1
        %v755 = vrot.slane %v750, 1
        %v756 = vrot.slane %v752, 1
        %vm757 = vcmask 744448
        %v758 = vsel %vm757, %v746, %v753
        %v759 = vsel %vm757, %v748, %v754
        %v760 = vsel %vm757, %v750, %v755
        %v761 = vsel %vm757, %v752, %v756
        %s766 = scalar_lea.vmem %s235, 7
        %767 = vst.msk [vmem:[%s766] ss:$8 sm:$0x7] %vm280, %v758
        %768 = vst.msk [vmem:[%s766] ss:$8 sm:$0x0] %vm280, %v758
        %s769 = scalar_lea.vmem %s235, 55
        %770 = vst.msk [vmem:[%s769] ss:$8 sm:$0x7] %vm280, %v759
        %771 = vst.msk [vmem:[%s769] ss:$8 sm:$0x0] %vm280, %v759
        %s772 = scalar_lea.vmem %s235, 103
        %773 = vst.msk [vmem:[%s772] ss:$8 sm:$0x7] %vm280, %v760
        %774 = vst.msk [vmem:[%s772] ss:$8 sm:$0x0] %vm280, %v760
        %s775 = scalar_lea.vmem %s235, 151
        %776 = vst.msk [vmem:[%s775] ss:$8 sm:$0x7] %vm280, %v761
        %777 = vst.msk [vmem:[%s775] ss:$8 sm:$0x0] %vm280, %v761
        %v778 = vld [vmem:[%s184] sm:$0xff]
        %v779 = vld [vmem:[%s184 + $0x8] sm:$0xff]
        %780 = vrot.lane.b32.xlu0 %v237, 38
        %v781 = vpop.permute.xlu0 %780
        %782 = vrot.lane.b32.xlu0 %v238, 38
        %v783 = vpop.permute.xlu0 %782
        %v784 = vrot.slane %v781, 4
        %v785 = vrot.slane %v783, 4
        %vm786 = vcmask 310272
        %v787 = vsel %vm786, %v784, %v781
        %v788 = vsel %vm304, %v784, %v785
        %v789 = vsel %vm786, %v788, %v783
        %v792 = vmul.f32 %v778, %v787
        %v793 = vmul.f32 %v779, %v789
        %v796 = vrot.slane %v792, 3
        %v797 = vrot.slane %v793, 6
        %v798 = vrot.slane %v793, 1
        %v799 = vsel %vm248, %v792, %v796
        %v800 = vsel %vm250, %v797, %v798
        %v801 = vsel %vm252, %v799, %v800
        %v802 = vsel %vm254, %v792, %v796
        %v803 = vsel %vm256, %v797, %v798
        %v804 = vsel %vm258, %v802, %v803
        %v805 = vrot.slane %v804, 1
        %v806 = vsel %vm250, %v792, %v796
        %v807 = vsel %vm262, %v797, %v798
        %v808 = vsel %vm264, %v806, %v807
        %v809 = vrot.slane %v808, 2
        %v810 = vsel %vm256, %v792, %v796
        %v811 = vsel %vm268, %v797, %v798
        %v812 = vsel %vm270, %v810, %v811
        %v813 = vrot.slane %v812, 3
        %814 = vrot.lane.b32.xlu0 %v801, 90
        %v815 = vpop.permute.xlu0 %814
        %816 = vrot.lane.b32.xlu0 %v805, 90
        %v817 = vpop.permute.xlu0 %816
        %818 = vrot.lane.b32.xlu0 %v809, 90
        %v819 = vpop.permute.xlu0 %818
        %820 = vrot.lane.b32.xlu0 %v813, 90
        %v821 = vpop.permute.xlu0 %820
        %v822 = vrot.slane %v815, 1
        %v823 = vrot.slane %v817, 1
        %v824 = vrot.slane %v819, 1
        %v825 = vrot.slane %v821, 1
        %vm826 = vcmask 736256
        %v827 = vsel %vm826, %v815, %v822
        %v828 = vsel %vm826, %v817, %v823
        %v829 = vsel %vm826, %v819, %v824
        %v830 = vsel %vm826, %v821, %v825
        %s835 = scalar_lea.vmem %s235, 24
        %836 = vst.msk [vmem:[%s835] ss:$8 sm:$0x7] %vm280, %v827
        %837 = vst.msk [vmem:[%s835] ss:$8 sm:$0x0] %vm280, %v827
        %s838 = scalar_lea.vmem %s235, 72
        %839 = vst.msk [vmem:[%s838] ss:$8 sm:$0x7] %vm280, %v828
        %840 = vst.msk [vmem:[%s838] ss:$8 sm:$0x0] %vm280, %v828
        %s841 = scalar_lea.vmem %s235, 120
        %842 = vst.msk [vmem:[%s841] ss:$8 sm:$0x7] %vm280, %v829
        %843 = vst.msk [vmem:[%s841] ss:$8 sm:$0x0] %vm280, %v829
        %s844 = scalar_lea.vmem %s235, 168
        %845 = vst.msk [vmem:[%s844] ss:$8 sm:$0x7] %vm280, %v830
        %846 = vst.msk [vmem:[%s844] ss:$8 sm:$0x0] %vm280, %v830
        %s847 = smul.u32 4, %s24
        %p848 = scmp.lt.s32.totalorder %s23, 1
        %s849 = scalar_select %p848, %s23, 1
        %p850 = scmp.lt.s32.totalorder %s847, 3
        %s851 = scalar_select %p850, %s847, 3
        %s852 = smul.addr %s851, 6
        %s853 = smul.addr %s849, 24
        %s854 = sadd.s32 %s852, %s853
        %s855 = smul.addr %s854, 8
        %s856 = scalar_lea.vmem %s2, %s855
        // Predicated region
        $region37: #{tpu_custom_call.1} parent=27 // pred_check
          %p857 = pneg %p107
        $region38: #{tpu_custom_call.1} parent=27 // pred_check_branch
          %859 = sbr.rel (%p857) target = $region40
        $region39: #{tpu_custom_call.1} parent=27 // pred_region
          %s860 = smul.u32 4, %s24
        $region40: #{tpu_custom_call.1} parent=27 // pred_fallthru
          _
      $region28: #{tpu_custom_call.1} parent=5 // pred_fallthru
        _
      %p861 = scmp.le.s32.totalorder 2, %s14
      // Predicated region
      $region41: #{tpu_custom_call.1} parent=5 // pred_check
        %p862 = pneg %p861
      $region42: #{tpu_custom_call.1} parent=5 // pred_check_branch
        %864 = sbr.rel (%p862) target = $region44
      $region43: #{tpu_custom_call.1} parent=5 // pred_region
        %s865 = ssub.s32 %s14, 2
        // Predicated region
        $region45: #{tpu_custom_call.1} parent=43 // pred_check
          %p866 = pneg %p113
        $region46: #{tpu_custom_call.1} parent=43 // pred_check_branch
          %868 = sbr.rel (%p866) target = $region48
        $region47: #{tpu_custom_call.1} parent=43 // pred_region
          %s869 = smul.u32 4, %s26
          %p870 = scmp.lt.s32.totalorder %s25, 1
          %s871 = scalar_select %p870, %s25, 1
          %p872 = scmp.lt.s32.totalorder %s869, 3
          %s873 = scalar_select %p872, %s869, 3
          %s874 = smul.addr %s873, 6
          %s875 = smul.addr %s871, 24
          %s876 = sadd.s32 %s874, %s875
          %s877 = smul.addr %s876, 8
          %s878 = scalar_lea.vmem %s2, %s877
        $region48: #{tpu_custom_call.1} parent=43 // pred_fallthru
          _
      $region44: #{tpu_custom_call.1} parent=5 // pred_fallthru
        _
    $region6: #{tpu_custom_call.1} parent=1 // loop_footer
      %s18 = sadd.s32 1, %s14
    $region7: #{tpu_custom_call.1} parent=1 // loop_footer_branch
      %13 = sbr.rel target = $region3
    $region8: #{tpu_custom_call.1} parent=1 // loop_exit
      _
    %879 = vsyncpa [#allocation3], 1
    %s880 = scalar_lea.sflag [#allocation3], 1
    %881 = vsyncpa %s880, 1
    %882 = vsyncpa [#allocation5], 1
    %s883 = scalar_lea.sflag [#allocation5], 1
    %884 = vsyncpa %s883, 1

</llo_original>
